<compile_context>
chip_gen: v7x
topology: tpu7x:2x2x1
jax: 0.10.0
libtpu: 0.0.40
codegen_flags: <defaults>
</compile_context>

<pallas_src>
import functools
import math

import jax
import jax.numpy as jnp
from jax import lax
from jax.experimental import pallas as pl
from jax.experimental.pallas import tpu as pltpu


def _scoped_vmem_limit():
    """Scoped-VMEM budget derived from this chip's physical capacity.
    128 MiB parts (v5e/v6e) -> ~96-100 MiB; 64 MiB parts (v7x) -> 48 MiB."""
    try:
        cap = pltpu.get_tpu_info().vmem_capacity_bytes
    except Exception:
        cap = 64 * 1024 * 1024  # conservative (v7x) fallback
    return min((cap * 3) // 4, 100 * 1024 * 1024)


_VMEM_LIMIT = _scoped_vmem_limit()


def _default_attn_tiles():
    # 128 MiB parts: bigger resident Q tile halves K/V re-streams across the kv axis.
    # 64 MiB parts (v7x): keep the conservative tiling so pipelining survives.
    if _VMEM_LIMIT >= 96 * 1024 * 1024:
        return 512, 1024
    return 256, 512


def _pick_tile(dim, pref, align):
    """Largest aligned divisor of `dim` <= pref; otherwise the full dimension
    (full-extent blocks are always BlockSpec-legal)."""
    if dim <= pref:
        return dim
    for t in range(pref, 0, -1):
        if dim % t == 0 and t % align == 0:
            return t
    return dim


# ----------------------------- Linear projection -----------------------------

def _linear_kernel(x_ref, w_ref, o_ref, acc_ref):
    @pl.when(pl.program_id(2) == 0)
    def _():
        acc_ref[...] = jnp.zeros_like(acc_ref)

    # x block (tm, tk) @ w block (tk, tn). Weights were transposed once at
    # param-preparation time, so this is the canonical MXU contraction with no
    # in-kernel re-layout of the (re-fetched) weight tiles.
    acc_ref[...] += lax.dot_general(
        x_ref[...], w_ref[...],
        dimension_numbers=(((1,), (0,)), ((), ())),
        preferred_element_type=jnp.float32,
    )

    @pl.when(pl.program_id(2) == pl.num_programs(2) - 1)
    def _():
        o_ref[...] = acc_ref[...].astype(o_ref.dtype)


def linear_nobias(x2d, w_t, *, out_dtype=None, tm=512, tn=512, tk=512):
    """x2d: (M, K); w_t: (K, N) pre-transposed weight. Returns x2d @ w_t : (M, N)."""
    M, K = x2d.shape
    K2, N = w_t.shape
    assert K == K2
    if x2d.dtype != w_t.dtype:
        x2d = x2d.astype(w_t.dtype)
    out_dtype = x2d.dtype if out_dtype is None else out_dtype

    tm = _pick_tile(M, tm, 8)
    tn = _pick_tile(N, tn, 128)
    tk = _pick_tile(K, tk, 128)
    gm, gn, gk = pl.cdiv(M, tm), pl.cdiv(N, tn), pl.cdiv(K, tk)

    itemsize = jnp.dtype(x2d.dtype).itemsize
    cost = pl.CostEstimate(
        flops=2 * M * N * K,
        transcendentals=0,
        # x is re-read gn times, w re-read gm times (honest re-stream accounting).
        bytes_accessed=itemsize * (M * K * gn + K * N * gm)
        + jnp.dtype(out_dtype).itemsize * M * N,
    )

    return pl.pallas_call(
        _linear_kernel,
        out_shape=jax.ShapeDtypeStruct((M, N), out_dtype),
        grid=(gm, gn, gk),
        in_specs=[
            pl.BlockSpec((tm, tk), lambda i, j, k: (i, k)),
            pl.BlockSpec((tk, tn), lambda i, j, k: (k, j)),
        ],
        out_specs=pl.BlockSpec((tm, tn), lambda i, j, k: (i, j)),
        scratch_shapes=[pltpu.VMEM((tm, tn), jnp.float32)],
        compiler_params=pltpu.CompilerParams(
            dimension_semantics=("parallel", "parallel", "arbitrary"),
            vmem_limit_bytes=_VMEM_LIMIT,
        ),
        cost_estimate=cost,
    )(x2d, w_t)


# -------------------------------- Attention ----------------------------------

def _attn_kernel(*refs, num_heads, d_kv, has_bias, approx_recip):
    if has_bias:
        q_ref, k_ref, v_ref, bias_ref, o_ref, m_ref, l_ref, acc_ref = refs
    else:
        q_ref, k_ref, v_ref, o_ref, m_ref, l_ref, acc_ref = refs
        bias_ref = None

    ki = pl.program_id(2)

    @pl.when(ki == 0)
    def _():
        m_ref[...] = jnp.full(m_ref.shape, -jnp.inf, m_ref.dtype)
        l_ref[...] = jnp.zeros(l_ref.shape, l_ref.dtype)
        acc_ref[...] = jnp.zeros(acc_ref.shape, acc_ref.dtype)

    # Static loop over heads; each head is a pair of plain 2-D MXU matmuls with
    # f32 accumulation on bf16 inputs.
    # TODO(synk): for d_kv < 128 the odd-head lane slices are not vreg-aligned; if a
    # bundle dump shows ld/st-slot saturation, load 128-lane head-pair slabs instead.
    for h in range(num_heads):
        lo = h * d_kv
        hi = lo + d_kv
        q_h = q_ref[0, :, lo:hi]          # (tq, Dk)   compute dtype (bf16)
        k_h = k_ref[0, :, lo:hi]          # (tkv, Dk)
        v_h = v_ref[0, :, lo:hi]          # (tkv, Dk)

        # scores = q @ k^T, contracting Dk against Dk (no explicit k transpose).
        # T5: NO 1/sqrt(d_kv) scaling.
        s = lax.dot_general(
            q_h, k_h, dimension_numbers=(((1,), (1,)), ((), ())),
            preferred_element_type=jnp.float32,
        )
        if has_bias:
            s = s + bias_ref[0, h].astype(jnp.float32)   # bias add stays in f32

        m_prev = m_ref[h]                                 # (tq, 1)
        m_new = jnp.maximum(m_prev, jnp.max(s, axis=-1, keepdims=True))
        alpha = jnp.exp(m_prev - m_new)
        p = jnp.exp(s - m_new)                            # (tq, tkv) f32
        l_ref[h] = alpha * l_ref[h] + jnp.sum(p, axis=-1, keepdims=True)
        acc_ref[h] = alpha * acc_ref[h] + lax.dot_general(
            p.astype(v_h.dtype), v_h,                     # bf16 MXU input, f32 acc
            dimension_numbers=(((1,), (0,)), ((), ())),
            preferred_element_type=jnp.float32,
        )
        m_ref[h] = m_new

    @pl.when(ki == pl.num_programs(2) - 1)
    def _():
        # Normalize each head and issue ONE lane-dense (tq, H*Dk) store instead of
        # H masked per-head stores at sub-128-lane offsets.
        rows = []
        for h in range(num_heads):
            inv = pl.reciprocal(l_ref[h], approx=approx_recip)   # EUP slot, ~free
            rows.append(acc_ref[h] * inv)
        o_ref[0, :, :] = jnp.concatenate(rows, axis=-1).astype(o_ref.dtype)


def attention_core(q, k, v, bias, *, num_heads, d_kv, tq=None, tkv=None,
                   approx_recip=True):
    """q: (B, T, H*Dk); k/v: (B, KL, H*Dk); bias: None or (Bb, H, T, KL), Bb in {1, B}.
    Returns (B, T, H*Dk) in the lane-dense head-interleaved layout for the wo matmul."""
    B, T, HD = q.shape
    KL = k.shape[1]
    assert HD == num_heads * d_kv
    has_bias = bias is not None

    tq_d, tkv_d = _default_attn_tiles()
    tq = _pick_tile(T, tq if tq is not None else tq_d, 8)
    tkv = _pick_tile(KL, tkv if tkv is not None else tkv_d, 128)
    q_tiles = pl.cdiv(T, tq)
    kv_tiles = pl.cdiv(KL, tkv)

    # v7x has 2 TensorCores: keep the parallel (B x q_tiles) space >= 2 tiles when possible.
    if B * q_tiles < 2 and T >= 16:
        tq = _pick_tile(T, max(8, tq // 2), 8)
        q_tiles = pl.cdiv(T, tq)

    def qo_map(b, qi, ki):
        return (b, qi, 0)

    def kv_map(b, qi, ki):
        return (b, ki, 0)

    in_specs = [
        pl.BlockSpec((1, tq, HD), qo_map),
        pl.BlockSpec((1, tkv, HD), kv_map),
        pl.BlockSpec((1, tkv, HD), kv_map),
    ]
    operands = [q, k, v]
    bias_bytes = 0
    if has_bias:
        bias_b = bias.shape[0]

        def bias_map(b, qi, ki):
            return (0 if bias_b == 1 else b, 0, qi, ki)

        in_specs.append(pl.BlockSpec((1, num_heads, tq, tkv), bias_map))
        operands.append(bias)
        bias_bytes = jnp.dtype(bias.dtype).itemsize * B * num_heads * T * KL

    itemsize = jnp.dtype(q.dtype).itemsize
    cost = pl.CostEstimate(
        flops=4 * B * num_heads * T * KL * d_kv,
        transcendentals=B * num_heads * T * KL,
        # K/V are re-streamed once per q tile (kv is the innermost grid axis).
        bytes_accessed=itemsize * (2 * B * T * HD + 2 * q_tiles * B * KL * HD)
        + bias_bytes,
    )

    kernel = functools.partial(_attn_kernel, num_heads=num_heads, d_kv=d_kv,
                               has_bias=has_bias, approx_recip=approx_recip)
    return pl.pallas_call(
        kernel,
        out_shape=jax.ShapeDtypeStruct((B, T, HD), q.dtype),
        grid=(B, q_tiles, kv_tiles),
        in_specs=in_specs,
        out_specs=pl.BlockSpec((1, tq, HD), qo_map),
        scratch_shapes=[
            pltpu.VMEM((num_heads, tq, 1), jnp.float32),       # running max
            pltpu.VMEM((num_heads, tq, 1), jnp.float32),       # running denominator
            pltpu.VMEM((num_heads, tq, d_kv), jnp.float32),    # f32 output accumulator
        ],
        compiler_params=pltpu.CompilerParams(
            dimension_semantics=("parallel", "parallel", "arbitrary"),
            vmem_limit_bytes=_VMEM_LIMIT,
        ),
        cost_estimate=cost,
    )(*operands)


# ----------------------- T5 relative-position bias (glue) --------------------

def _t5_relative_position_bucket(relative_position, bidirectional, num_buckets, max_distance):
    relative_buckets = jnp.zeros_like(relative_position)
    if bidirectional:
        num_buckets //= 2
        relative_buckets = relative_buckets + (relative_position > 0).astype(jnp.int32) * num_buckets
        relative_position = jnp.abs(relative_position)
    else:
        relative_position = -jnp.minimum(relative_position, jnp.zeros_like(relative_position))
    max_exact = num_buckets // 2
    is_small = relative_position < max_exact
    rp_safe = jnp.maximum(relative_position, 1)  # avoid log(0); masked by is_small
    relative_position_if_large = max_exact + (
        jnp.log(rp_safe.astype(jnp.float32) / max_exact)
        / math.log(max_distance / max_exact)
        * (num_buckets - max_exact)
    ).astype(jnp.int32)
    relative_position_if_large = jnp.minimum(relative_position_if_large, num_buckets - 1)
    relative_buckets = relative_buckets + jnp.where(is_small, relative_position, relative_position_if_large)
    return relative_buckets


def compute_t5_relative_position_bias(emb_weight, query_length, key_length,
                                      num_buckets, max_distance, is_causal):
    context_position = jnp.arange(query_length, dtype=jnp.int32)[:, None]
    memory_position = jnp.arange(key_length, dtype=jnp.int32)[None, :]
    relative_position = memory_position - context_position  # (T, KL)
    buckets = _t5_relative_position_bucket(
        relative_position, bidirectional=not is_causal,
        num_buckets=num_buckets, max_distance=max_distance)
    values = emb_weight[buckets]                     # (T, KL, H)
    values = jnp.transpose(values, (2, 0, 1))[None]  # (1, H, T, KL)
    return values


# ----------------------------- Parameter prep --------------------------------

def prepare_t5_attention_params(params, compute_dtype=jnp.bfloat16):
    """One-time (param-load time) preparation: transpose the nn.Linear (N, K) weights
    to (K, N) and cast to the MXU-native compute dtype (bf16 with f32 accumulation)."""
    return {
        "compute_dtype": jnp.dtype(compute_dtype),
        "wq_t": jnp.asarray(params["wq"]).T.astype(compute_dtype),
        "wk_t": jnp.asarray(params["wk"]).T.astype(compute_dtype),
        "wv_t": jnp.asarray(params["wv"]).T.astype(compute_dtype),
        "wo_t": jnp.asarray(params["wo"]).T.astype(compute_dtype),
        "rel_bias": params.get("rel_bias"),   # kept f32 for the (tiny) bias table
    }


# ---------------------------------- Forward ----------------------------------

def t5_attention_forward(x, prep, *, num_heads, d_kv, num_buckets, max_distance,
                         is_decoder=False, attention_mask=None, position_bias=None,
                         key_value_states=None):
    b, t, d_model = x.shape
    kv_in = x if key_value_states is None else key_value_states
    key_length = kv_in.shape[1]
    inner_dim = num_heads * d_kv
    cdt = prep["compute_dtype"]

    x2 = x.reshape(b * t, d_model).astype(cdt)
    kv2 = kv_in.reshape(b * key_length, d_model).astype(cdt)

    # Projections stay in the lane-dense (B, T, H*Dk) layout end-to-end: no head
    # transposes anywhere; the attention kernel slices heads via static lane offsets.
    q = linear_nobias(x2, prep["wq_t"], out_dtype=cdt).reshape(b, t, inner_dim)
    k = linear_nobias(kv2, prep["wk_t"], out_dtype=cdt).reshape(b, key_length, inner_dim)
    v = linear_nobias(kv2, prep["wv_t"], out_dtype=cdt).reshape(b, key_length, inner_dim)

    if position_bias is None:
        if prep.get("rel_bias") is None:
            if attention_mask is None:
                # Fast path: skip the bias operand entirely (no zeros stream).
                returned_bias = jnp.zeros((1, num_heads, t, key_length), dtype=x.dtype)
                kernel_bias = None
            else:
                returned_bias = (jnp.zeros((1, num_heads, t, key_length), dtype=x.dtype)
                                 + attention_mask).astype(x.dtype)
                kernel_bias = returned_bias
        else:
            pb = compute_t5_relative_position_bias(
                prep["rel_bias"], t, key_length, num_buckets, max_distance,
                is_causal=is_decoder)
            if attention_mask is not None:
                pb = pb + attention_mask
            returned_bias = pb.astype(x.dtype)
            kernel_bias = returned_bias
    else:
        returned_bias = position_bias
        kernel_bias = position_bias

    if kernel_bias is not None:
        # Halve the dominant bias HBM/VMEM stream; the kernel still adds it in f32.
        # Note: T5 masks are finite large-negatives, so a -inf-free bf16 cast is safe.
        kernel_bias = kernel_bias.astype(cdt)

    out_heads = attention_core(q, k, v, kernel_bias, num_heads=num_heads, d_kv=d_kv)
    # hidden dropout in eval mode -> identity
    out = linear_nobias(out_heads.reshape(b * t, inner_dim), prep["wo_t"],
                        out_dtype=x.dtype).reshape(b, t, d_model)
    return out, returned_bias


# ---------------------------- Reference (pure jnp) ----------------------------

def t5_attention_reference(x, params, *, num_heads, d_kv, num_buckets, max_distance,
                           is_decoder=False):
    b, t, d_model = x.shape
    q = (x @ params["wq"].T).reshape(b, t, num_heads, d_kv).transpose(0, 2, 1, 3)
    k = (x @ params["wk"].T).reshape(b, t, num_heads, d_kv).transpose(0, 2, 1, 3)
    v = (x @ params["wv"].T).reshape(b, t, num_heads, d_kv).transpose(0, 2, 1, 3)
    scores = jnp.einsum("bhtd,bhkd->bhtk", q, k)
    if params.get("rel_bias") is None:
        bias = jnp.zeros((1, num_heads, t, t), dtype=x.dtype)
    else:
        bias = compute_t5_relative_position_bias(
            params["rel_bias"], t, t, num_buckets, max_distance,
            is_causal=is_decoder).astype(x.dtype)
    scores = scores + bias
    p = jax.nn.softmax(scores, axis=-1)
    out = jnp.einsum("bhtk,bhkd->bhtd", p, v)
    out = out.transpose(0, 2, 1, 3).reshape(b, t, num_heads * d_kv)
    return out @ params["wo"].T, bias


# ------------------------------------ Main ------------------------------------

if __name__ == "__main__":
    # Config (inner_dim == d_model so the PyTorch .view(b, t, d) is valid)
    d_model = 32
    num_heads = 4
    d_kv = 8
    inner_dim = num_heads * d_kv
    num_buckets = 32
    max_distance = 128
    is_decoder = False
    B, T = 2, 8

    key = jax.random.PRNGKey(0)
    k0, k1, k2, k3, k4, kx = jax.random.split(key, 6)

    # Deterministic parameter init, matching init_weights() stds (PyTorch layouts).
    params = {
        "wq": jax.random.normal(k0, (inner_dim, d_model), jnp.float32) * (d_model * d_kv) ** (-0.5),
        "wk": jax.random.normal(k1, (inner_dim, d_model), jnp.float32) * d_model ** (-0.5),
        "wv": jax.random.normal(k2, (inner_dim, d_model), jnp.float32) * d_model ** (-0.5),
        "wo": jax.random.normal(k3, (d_model, inner_dim), jnp.float32) * inner_dim ** (-0.5),
        "rel_bias": jax.random.normal(k4, (num_buckets, num_heads), jnp.float32) * d_model ** (-0.5),
    }
    x = jax.random.normal(kx, (B, T, d_model), jnp.float32)

    # --- Path 1: relative position bias present (bf16 compute, f32 accumulation) ---
    prep = prepare_t5_attention_params(params, compute_dtype=jnp.bfloat16)
    out, pos_bias = t5_attention_forward(
        x, prep, num_heads=num_heads, d_kv=d_kv,
        num_buckets=num_buckets, max_distance=max_distance, is_decoder=is_decoder)
    out = jax.block_until_ready(out)
    pos_bias = jax.block_until_ready(pos_bias)

    ref_out, ref_bias = t5_attention_reference(
        x, params, num_heads=num_heads, d_kv=d_kv,
        num_buckets=num_buckets, max_distance=max_distance, is_decoder=is_decoder)

    assert out.shape == (B, T, d_model)
    assert pos_bias.shape == (1, num_heads, T, T)
    # bf16 matmuls (f32 accumulation) + approximate EUP reciprocal => relaxed tolerance
    # vs. the f32 reference.
    assert jnp.allclose(out, ref_out, atol=3e-2, rtol=3e-2)
    assert jnp.allclose(pos_bias, ref_bias, atol=1e-6, rtol=1e-6)

    # --- Path 2: no relative bias, no mask (exercises the bias-free kernel variant) ---
    params_nb = dict(params, rel_bias=None)
    prep_nb = prepare_t5_attention_params(params_nb, compute_dtype=jnp.bfloat16)
    out_nb, bias_nb = t5_attention_forward(
        x, prep_nb, num_heads=num_heads, d_kv=d_kv,
        num_buckets=num_buckets, max_distance=max_distance, is_decoder=is_decoder)
    out_nb = jax.block_until_ready(out_nb)

    ref_out_nb, ref_bias_nb = t5_attention_reference(
        x, params_nb, num_heads=num_heads, d_kv=d_kv,
        num_buckets=num_buckets, max_distance=max_distance, is_decoder=is_decoder)
    assert jnp.allclose(out_nb, ref_out_nb, atol=3e-2, rtol=3e-2)
    assert jnp.allclose(bias_nb, ref_bias_nb)

    print("KERNEL_OK")
</pallas_src>

<mosaic_0001>
module attributes {stable_mosaic.version = 11 : i64} {
  func.func @_linear_kernel(%arg0: i32, %arg1: i32, %arg2: i32, %arg3: memref<16x32xbf16, #tpu.memory_space<vmem>>, %arg4: memref<32x32xbf16, #tpu.memory_space<vmem>>, %arg5: memref<16x32xbf16, #tpu.memory_space<vmem>>, %arg6: memref<16x32xf32, #tpu.memory_space<vmem>>) attributes {dimension_semantics = [#tpu.dimension_semantics<parallel>, #tpu.dimension_semantics<parallel>, #tpu.dimension_semantics<arbitrary>], iteration_bounds = array<i64: 1, 1, 1>, scalar_prefetch = 0 : i64, scratch_operands = 1 : i64, tpu.core_type = #tpu.core_type<tc>, window_params = [{transform_indices = @transform_0, window_bounds = array<i64: 16, 32>}, {transform_indices = @transform_1, window_bounds = array<i64: 32, 32>}, {transform_indices = @transform_2, window_bounds = array<i64: 16, 32>}]} {
    %c0_i32 = arith.constant 0 : i32
    %0 = arith.cmpi eq, %arg2, %c0_i32 : i32
    %1 = arith.extui %0 : i1 to i32
    %c0_i32_0 = arith.constant 0 : i32
    %2 = arith.cmpi ne, %1, %c0_i32_0 : i32
    scf.if %2 {
      %cst_10 = arith.constant 0.000000e+00 : f32
      %12 = vector.broadcast %cst_10 : f32 to vector<16x32xf32>
      %c0_11 = arith.constant 0 : index
      %c0_12 = arith.constant 0 : index
      %13 = vector.load %arg6[%c0_11, %c0_12] : memref<16x32xf32, #tpu.memory_space<vmem>>, vector<16x32xf32>
      tpu.vector_store %arg6[%c0_11, %c0_12], %12 {strides = array<i32>} : memref<16x32xf32, #tpu.memory_space<vmem>>, vector<16x32xf32>,
    } else {
    }
    %c0 = arith.constant 0 : index
    %c0_1 = arith.constant 0 : index
    %3 = vector.load %arg6[%c0, %c0_1] : memref<16x32xf32, #tpu.memory_space<vmem>>, vector<16x32xf32>
    %c0_2 = arith.constant 0 : index
    %c0_3 = arith.constant 0 : index
    %4 = vector.load %arg3[%c0_2, %c0_3] : memref<16x32xbf16, #tpu.memory_space<vmem>>, vector<16x32xbf16>
    %c0_4 = arith.constant 0 : index
    %c0_5 = arith.constant 0 : index
    %5 = vector.load %arg4[%c0_4, %c0_5] : memref<32x32xbf16, #tpu.memory_space<vmem>>, vector<32x32xbf16>
    %cst = arith.constant dense<0.000000e+00> : vector<16x32xf32>
    %6 = tpu.matmul %4, %5, %cst {dimension_numbers = #tpu.dot_dimension_numbers<[1], [0], [0], [1], [0, 0, 1, 1], [], []>} : vector<16x32xbf16>, vector<32x32xbf16>, vector<16x32xf32> -> vector<16x32xf32>
    %7 = arith.addf %3, %6 : vector<16x32xf32>
    %c0_6 = arith.constant 0 : index
    %c0_7 = arith.constant 0 : index
    %8 = vector.load %arg6[%c0_6, %c0_7] : memref<16x32xf32, #tpu.memory_space<vmem>>, vector<16x32xf32>
    tpu.vector_store %arg6[%c0_6, %c0_7], %7 {strides = array<i32>} : memref<16x32xf32, #tpu.memory_space<vmem>>, vector<16x32xf32>,
    %c0_i32_8 = arith.constant 0 : i32
    %9 = arith.cmpi eq, %arg2, %c0_i32_8 : i32
    %10 = arith.extui %9 : i1 to i32
    %c0_i32_9 = arith.constant 0 : i32
    %11 = arith.cmpi ne, %10, %c0_i32_9 : i32
    scf.if %11 {
      %c0_10 = arith.constant 0 : index
      %c0_11 = arith.constant 0 : index
      %12 = vector.load %arg6[%c0_10, %c0_11] : memref<16x32xf32, #tpu.memory_space<vmem>>, vector<16x32xf32>
      %13 = arith.truncf %12 : vector<16x32xf32> to vector<16x32xbf16>
      %c0_12 = arith.constant 0 : index
      %c0_13 = arith.constant 0 : index
      %14 = vector.load %arg5[%c0_12, %c0_13] : memref<16x32xbf16, #tpu.memory_space<vmem>>, vector<16x32xbf16>
      tpu.vector_store %arg5[%c0_12, %c0_13], %13 {strides = array<i32>} : memref<16x32xbf16, #tpu.memory_space<vmem>>, vector<16x32xbf16>,
    } else {
    }
    return
  }
  func.func @transform_0(%arg0: i32, %arg1: i32, %arg2: i32) -> (i32, i32) {
    %c0_i32 = arith.constant 0 : i32
    return %arg0, %arg2 : i32, i32
  }
  func.func @transform_1(%arg0: i32, %arg1: i32, %arg2: i32) -> (i32, i32) {
    %c0_i32 = arith.constant 0 : i32
    return %arg2, %arg1 : i32, i32
  }
  func.func @transform_2(%arg0: i32, %arg1: i32, %arg2: i32) -> (i32, i32) {
    %c0_i32 = arith.constant 0 : i32
    return %arg0, %arg1 : i32, i32
  }
}

</mosaic_0001>

<llo_original>
// kernel: tpu_custom_call.1
$region0: #{tpu_custom_call.1}
  #allocation0 [shape = 'u32[]', space=smem, size = 0x4, offset = 0x4, fixed_abs, tag = 'smem constant byte address 0x4 - core index']
  #allocation1 [shape = 'u32[144,128]{1,0:T(1,128)}', space=vmem, size = 0x12000, scoped, tag = 'internal scratch']
  #allocation2 [shape = 'f32[16,32]{1,0:T(8,128)}', space=vmem, size = 0x2000, scoped, tag = 'scratch operand']
  %s0 = inlined_call_operand.hbm [shape: bf16[16,32], index: 0, kind: input, shape index: {}]
  %s1 = inlined_call_operand.hbm [shape: bf16[32,32], index: 1, kind: input, shape index: {}]
  %s2 = inlined_call_operand.hbm [shape: bf16[16,32], index: 2, kind: output, shape index: {}]
  %s3 = sld [smem:[#allocation0]]
  $region34: #{tpu_custom_call.1} parent=0
    _
  %s5 = ssub.s32 1, %s3
  %s6 = scalar_select 0, %s5, %s3
  $region1: #{tpu_custom_call.1} parent=0
    #allocation3 [shape = 'u8[4096]{0}', space=vmem, size = 0x1000, scoped, tag = 'input window, operand 0, single buffered']
    #allocation4 [shape = 's32[1]{0}', space=sflag, size = 0x4, scoped, tag = 'scoped memory for tpu_custom_call.1']
    #allocation5 [shape = 's32[1]{0}', space=sflag, size = 0x4, scoped, tag = 'scoped memory for tpu_custom_call.1']
    #allocation6 [shape = 'u8[8192]{0}', space=vmem, size = 0x2000, scoped, tag = 'input window, operand 1, single buffered']
    #allocation7 [shape = 's32[1]{0}', space=sflag, size = 0x4, scoped, tag = 'scoped memory for tpu_custom_call.1']
    #allocation8 [shape = 'u8[4096]{0}', space=vmem, size = 0x1000, scoped, tag = 'output window, operand 0, single buffered']
    %7 = vsyncpa [#allocation4], 0
    %8 = vsyncpa [#allocation7], 0
    %9 = vsyncpa [#allocation5], 0
    // Predicated region
    $region2: #{tpu_custom_call.1} parent=1 // pred_check
      _
    $region3: #{tpu_custom_call.1} parent=1 // pred_check_branch
      %11 = sbr.rel (0) target = $region5
    $region4: #{tpu_custom_call.1} parent=1 // pred_region
      %s13 = ssub.s32 128, 128
      %14 = vsyncadd [#allocation4], %s13
      %s15 = sshll.u32 [#allocation3], 4
      %s16 = int_to_ptr.vmem [resolvable:$true] %s15
      %21 = dma.hbm_to_vmem [thread:$0]  %s0, 128, %s16, [#allocation4], 64, 64, 4
    $region5: #{tpu_custom_call.1} parent=1 // pred_fallthru
      _
    // Predicated region
    $region6: #{tpu_custom_call.1} parent=1 // pred_check
      _
    $region7: #{tpu_custom_call.1} parent=1 // pred_check_branch
      %23 = sbr.rel (0) target = $region9
    $region8: #{tpu_custom_call.1} parent=1 // pred_region
      %s25 = ssub.s32 256, 256
      %26 = vsyncadd [#allocation7], %s25
      %s27 = sshll.u32 [#allocation6], 4
      %s28 = int_to_ptr.vmem [resolvable:$true] %s27
      %33 = dma.hbm_to_vmem [thread:$0]  %s1, 256, %s28, [#allocation7], 64, 64, 4
    $region9: #{tpu_custom_call.1} parent=1 // pred_fallthru
      _
    // Predicated region
    $region10: #{tpu_custom_call.1} parent=1 // pred_check
      _
    $region11: #{tpu_custom_call.1} parent=1 // pred_check_branch
      %35 = sbr.rel (0) target = $region13
    $region12: #{tpu_custom_call.1} parent=1 // pred_region
      %36 = dma.done [#allocation4], 128
    $region13: #{tpu_custom_call.1} parent=1 // pred_fallthru
      _
    // Predicated region
    $region14: #{tpu_custom_call.1} parent=1 // pred_check
      _
    $region15: #{tpu_custom_call.1} parent=1 // pred_check_branch
      %38 = sbr.rel (0) target = $region17
    $region16: #{tpu_custom_call.1} parent=1 // pred_region
      %39 = dma.done [#allocation7], 256
    $region17: #{tpu_custom_call.1} parent=1 // pred_fallthru
      _
    %p41 = scmp.eq.s32.totalorder 0, 0
    // Predicated region
    $region18: #{tpu_custom_call.1} parent=1 // pred_check
      %p42 = pneg %p41
    $region19: #{tpu_custom_call.1} parent=1 // pred_check_branch
      %44 = sbr.rel (%p42) target = $region21
    $region20: #{tpu_custom_call.1} parent=1 // pred_region
      %vm45 = vcmask 261120
      %46 = vst.msk [vmem:[#allocation2] sm:$0xff] %vm45, 0.0
      %47 = vst.msk [vmem:[#allocation2 + $0x8] sm:$0xff] %vm45, 0.0
    $region21: #{tpu_custom_call.1} parent=1 // pred_fallthru
      _
    %v48 = vld [vmem:[#allocation2] sm:$0xff]
    %v49 = vld [vmem:[#allocation2 + $0x8] sm:$0xff]
    %v50 = vld [vmem:[#allocation3] sm:$0xf]
    %v51 = vld [vmem:[#allocation3 + $0x4] sm:$0xf]
    %v52 = vld [vmem:[#allocation6] sm:$0xf]
    %v53 = vld [vmem:[#allocation6 + $0x4] sm:$0xf]
    %v54 = vld [vmem:[#allocation6 + $0x8] sm:$0xf]
    %v55 = vld [vmem:[#allocation6 + $0xc] sm:$0xf]
    %v58 = vunpack.c.l.b16 %v50
    %v59 = vunpack.c.l.b16 %v51
    %v60 = vpack.c.b16 %v59, %v58
    %v65 = vunpack.c.l.b16 %v52
    %v66 = vunpack.c.l.b16 %v53
    %v67 = vunpack.c.l.b16 %v54
    %v68 = vunpack.c.l.b16 %v55
    %v69 = vpack.c.b16 %v66, %v65
    %v70 = vpack.c.b16 %v68, %v67
    %vm73 = vcmask 261120
    %v75 = vsel %vm73, %v60, 0
    %77 = vmatprep.subr.bf16.mxu0 0
    %78 = vmatpush1.bf16.msra.mxu0 %v69
    %79 = vmatprep.subr.bf16.mxu0 0
    %80 = vmatpush1.bf16.msra.mxu0 %v70
    %81 = vmatprep.subr.bf16.mxu0 0
    %82 = vmatpush1.bf16.msra.mxu0 0
    %83 = vmatprep.subr.bf16.mxu0 0
    %84 = vmatpush1.bf16.msra.mxu0 0
    %85 = vmatprep.subr.bf16.mxu0 0
    %86 = vmatpush1.bf16.msra.mxu0 0
    %87 = vmatprep.subr.bf16.mxu0 0
    %88 = vmatpush1.bf16.msra.mxu0 0
    %89 = vmatprep.subr.bf16.mxu0 0
    %90 = vmatpush1.bf16.msra.mxu0 0
    %91 = vmatprep.subr.bf16.mxu0 0
    %92 = vmatpush1.bf16.msra.mxu0 0
    %93 = vmatprep.subr.bf16.mxu0 0
    %94 = vmatpush1.bf16.msra.mxu0 0
    %95 = vmatprep.subr.bf16.mxu0 0
    %96 = vmatpush1.bf16.msra.mxu0 0
    %97 = vmatprep.subr.bf16.mxu0 0
    %98 = vmatpush1.bf16.msra.mxu0 0
    %99 = vmatprep.subr.bf16.mxu0 0
    %100 = vmatpush1.bf16.msra.mxu0 0
    %101 = vmatprep.subr.bf16.mxu0 0
    %102 = vmatpush1.bf16.msra.mxu0 0
    %103 = vmatprep.subr.bf16.mxu0 0
    %104 = vmatpush1.bf16.msra.mxu0 0
    %105 = vmatprep.subr.bf16.mxu0 0
    %106 = vmatpush1.bf16.msra.mxu0 0
    %107 = vmatprep.subr.bf16.mxu0 0
    %108 = vmatpush1.bf16.msra.mxu0 0
    %109 = vmatprep.mubr.bf16.mxu0 0
    %110 = vmatmul.mubr.bf16.gmra.mrb[0].mxu0 %v75
    %v111 = vpop.f32.mrb[0].mxu0
    %v112 = vadd.f32 0.0, %v111
    %v113 = vpop.f32.mrb[0].mxu0
    %v114 = vpop.f32.mrb[0].mxu0
    %v115 = vadd.f32 0.0, %v114
    %v116 = vpop.f32.mrb[0].mxu0
    %117 = vdwg.mxu0
    %v118 = vadd.f32 %v48, %v112
    %v119 = vadd.f32 %v49, %v115
    %120 = vst.msk [vmem:[#allocation2] sm:$0xff] %vm73, %v118
    %121 = vst.msk [vmem:[#allocation2 + $0x8] sm:$0xff] %vm73, %v119
    // Predicated region
    $region22: #{tpu_custom_call.1} parent=1 // pred_check
      %p122 = pneg %p41
    $region23: #{tpu_custom_call.1} parent=1 // pred_check_branch
      %124 = sbr.rel (%p122) target = $region25
    $region24: #{tpu_custom_call.1} parent=1 // pred_region
      %v125 = vld [vmem:[#allocation2] sm:$0xff]
      %v126 = vld [vmem:[#allocation2 + $0x8] sm:$0xff]
      %v127 = vpack.c.bf16 %v126, %v125
      %v129 = vunpack.c.l.b16 %v127
      %v130 = vunpack.c.h.b16 %v127
      %v131 = vpack.c.b16 %v129, %v129
      %v132 = vpack.c.b16 %v130, %v130
      %vm135 = vcmask 257024
      %136 = vst.msk [vmem:[#allocation8] sm:$0xf] %vm135, %v131
      %137 = vst.msk [vmem:[#allocation8 + $0x4] sm:$0xf] %vm135, %v132
    $region25: #{tpu_custom_call.1} parent=1 // pred_fallthru
      _
    // Predicated region
    $region26: #{tpu_custom_call.1} parent=1 // pred_check
      _
    $region27: #{tpu_custom_call.1} parent=1 // pred_check_branch
      %139 = sbr.rel (0) target = $region29
    $region28: #{tpu_custom_call.1} parent=1 // pred_region
      %s141 = ssub.s32 128, 128
      %142 = vsyncadd [#allocation5], %s141
      %s143 = sshll.u32 [#allocation8], 4
      %s144 = int_to_ptr.vmem [resolvable:$true] %s143
      %149 = dma.vmem_to_hbm [thread:$0]  %s144, 128, %s2, [#allocation5], 64, 64, 4
    $region29: #{tpu_custom_call.1} parent=1 // pred_fallthru
      _
    // Predicated region
    $region30: #{tpu_custom_call.1} parent=1 // pred_check
      _
    $region31: #{tpu_custom_call.1} parent=1 // pred_check_branch
      %151 = sbr.rel (0) target = $region33
    $region32: #{tpu_custom_call.1} parent=1 // pred_region
      %152 = dma.done [#allocation5], 128
    $region33: #{tpu_custom_call.1} parent=1 // pred_fallthru
      _
    %153 = vsyncpa [#allocation4], 1
    %154 = vsyncpa [#allocation7], 1
    %155 = vsyncpa [#allocation5], 1

</llo_original>
